<compile_context>
chip_gen: v6e
topology: v6e:2x2x1
jax: 0.10.0
libtpu: 0.0.40
codegen_flags: <defaults>
</compile_context>

<pallas_src>
import functools

import numpy as np
import jax
import jax.numpy as jnp
from jax.experimental import pallas as pl
from jax.experimental.pallas import tpu as pltpu

LEAKY_SLOPE = 0.01  # nn.LeakyReLU() default negative_slope


def _round_up(x, m):
    return ((x + m - 1) // m) * m


# --------------------------------------------------------------------------
# Fused Linear + LeakyReLU kernel (tiled matmul with K-axis accumulator)
# --------------------------------------------------------------------------
def _linear_lrelu_kernel(x_ref, w_ref, b_ref, o_ref, acc_ref, *, negative_slope):
    k = pl.program_id(2)

    @pl.when(k == 0)
    def _init():
        acc_ref[...] = jnp.zeros_like(acc_ref)

    acc_ref[...] += jnp.dot(x_ref[...], w_ref[...],
                            preferred_element_type=jnp.float32)

    @pl.when(k == pl.num_programs(2) - 1)
    def _finalize():
        y = acc_ref[...] + b_ref[...]                       # bias added exactly once
        o_ref[...] = jnp.where(y >= 0.0, y, negative_slope * y).astype(o_ref.dtype)


def linear_leaky_relu(x2d, w, b, *, negative_slope=LEAKY_SLOPE,
                      tm=128, tn=1024, tk=2048):
    """y = leaky_relu(x2d @ w + b) as one tiled Pallas kernel.

    x2d: (B, K) float   (cast to bf16 for the MXU)
    w:   (K, N) bf16
    b:   (1, N) f32
    returns (B, N) f32
    """
    B, K = x2d.shape
    Kw, N = w.shape
    assert K == Kw and b.shape == (1, N)

    # Tile sizes: MXU/lane aligned, clamped to the (padded) problem size.
    tm = min(tm, _round_up(B, 8))        # sublane multiple (pad tiny batches to 8)
    tn = min(tn, _round_up(N, 128))      # lane-dense output tiles (full N if possible)
    tk = min(tk, _round_up(K, 128))
    B_pad = _round_up(B, tm)
    N_pad = _round_up(N, tn)
    K_pad = _round_up(K, tk)

    # Zero padding: padded rows/cols contribute 0 to the dot product.
    x_p = jnp.pad(x2d.astype(jnp.bfloat16), ((0, B_pad - B), (0, K_pad - K)))
    w_p = jnp.pad(w.astype(jnp.bfloat16), ((0, K_pad - K), (0, N_pad - N)))
    b_p = jnp.pad(b.astype(jnp.float32), ((0, 0), (0, N_pad - N)))

    grid = (B_pad // tm, N_pad // tn, K_pad // tk)

    # Roofline hint for the XLA scheduler (weight stream dominates bytes).
    cost = pl.CostEstimate(
        flops=2 * B_pad * K_pad * N_pad,
        transcendentals=0,
        bytes_accessed=(x_p.size * 2 * (N_pad // tn)
                        + w_p.size * 2 * (B_pad // tm)
                        + B_pad * N_pad * 4),
    )

    out = pl.pallas_call(
        functools.partial(_linear_lrelu_kernel, negative_slope=negative_slope),
        out_shape=jax.ShapeDtypeStruct((B_pad, N_pad), jnp.float32),
        grid_spec=pltpu.PrefetchScalarGridSpec(
            num_scalar_prefetch=0,
            grid=grid,
            in_specs=[
                pl.BlockSpec((tm, tk), lambda i, j, k: (i, k)),   # activations
                pl.BlockSpec((tk, tn), lambda i, j, k: (k, j)),   # weight slab
                pl.BlockSpec((1, tn), lambda i, j, k: (0, j)),    # bias
            ],
            out_specs=pl.BlockSpec((tm, tn), lambda i, j, k: (i, j)),
            scratch_shapes=[pltpu.VMEM((tm, tn), jnp.float32)],   # f32 accumulator
        ),
        compiler_params=pltpu.CompilerParams(
            dimension_semantics=("parallel", "parallel", "arbitrary"),
            vmem_limit_bytes=32 * 1024 * 1024,   # portable v5e/v6e/v7x scoped limit
        ),
        cost_estimate=cost,
    )(x_p, w_p, b_p)

    return out[:B, :N]


# --------------------------------------------------------------------------
# Parameters + forward pass
# --------------------------------------------------------------------------
def init_params(key, feat_dim, rep_size):
    w = 0.05 * jax.random.normal(key, (feat_dim, rep_size), jnp.float32)
    return {
        "w_lin": w.astype(jnp.bfloat16),                 # bf16 storage for the MXU
        "b_lin": jnp.zeros((1, rep_size), jnp.float32),
    }


@jax.jit
def resnet_modified_medium_forward(params, feat_nchw):
    """feat_nchw: (B, C, 7, 7) layer4-style feature map (NCHW)."""
    B = feat_nchw.shape[0]
    flat = feat_nchw.reshape(B, -1)      # matches torch x.view(-1, 7*7*base_size)
    # dropout2d / dropout: identity in eval mode
    return linear_leaky_relu(flat, params["w_lin"], params["b_lin"])


# --------------------------------------------------------------------------
if __name__ == "__main__":
    key = jax.random.PRNGKey(0)

    # Small stand-in shapes: (B, 2048, 7, 7) -> (B, 32, 7, 7); rep 1024 -> 256.
    B, C, H, W = 2, 32, 7, 7
    rep_size = 256
    feat_dim = C * H * W

    kp, kx = jax.random.split(key)
    params = init_params(kp, feat_dim, rep_size)
    x = jax.random.normal(kx, (B, C, H, W), jnp.float32)

    out = resnet_modified_medium_forward(params, x)
    jax.block_until_ready(out)

    # Plain-JAX reference (same bf16 operands, f32 accumulation).
    flat = x.reshape(B, -1).astype(jnp.bfloat16)
    ref = jnp.dot(flat, params["w_lin"],
                  preferred_element_type=jnp.float32) + params["b_lin"]
    ref = jnp.where(ref >= 0.0, ref, LEAKY_SLOPE * ref)

    assert out.shape == (B, rep_size)
    assert out.dtype == jnp.float32
    np.testing.assert_allclose(np.asarray(out), np.asarray(ref), rtol=2e-2, atol=2e-2)
    print("KERNEL_OK")
</pallas_src>

<mosaic_0001>
module attributes {stable_mosaic.version = 11 : i64} {
  func.func @_linear_lrelu_kernel(%arg0: i32, %arg1: i32, %arg2: i32, %arg3: memref<8x1664xbf16, #tpu.memory_space<vmem>>, %arg4: memref<1664x256xbf16, #tpu.memory_space<vmem>>, %arg5: memref<1x256xf32, #tpu.memory_space<vmem>>, %arg6: memref<8x256xf32, #tpu.memory_space<vmem>>, %arg7: memref<8x256xf32, #tpu.memory_space<vmem>>) attributes {dimension_semantics = [#tpu.dimension_semantics<parallel>, #tpu.dimension_semantics<parallel>, #tpu.dimension_semantics<arbitrary>], iteration_bounds = array<i64: 1, 1, 1>, scalar_prefetch = 0 : i64, scratch_operands = 1 : i64, tpu.core_type = #tpu.core_type<tc>, window_params = [{transform_indices = @transform_0, window_bounds = array<i64: 8, 1664>}, {transform_indices = @transform_1, window_bounds = array<i64: 1664, 256>}, {transform_indices = @transform_2, window_bounds = array<i64: 1, 256>}, {transform_indices = @transform_3, window_bounds = array<i64: 8, 256>}]} {
    %c0_i32 = arith.constant 0 : i32
    %0 = arith.cmpi eq, %arg2, %c0_i32 : i32
    %1 = arith.extui %0 : i1 to i32
    %c0_i32_0 = arith.constant 0 : i32
    %2 = arith.cmpi ne, %1, %c0_i32_0 : i32
    scf.if %2 {
      %cst_10 = arith.constant 0.000000e+00 : f32
      %12 = vector.broadcast %cst_10 : f32 to vector<8x256xf32>
      %c0_11 = arith.constant 0 : index
      %c0_12 = arith.constant 0 : index
      %13 = vector.load %arg7[%c0_11, %c0_12] : memref<8x256xf32, #tpu.memory_space<vmem>>, vector<8x256xf32>
      tpu.vector_store %arg7[%c0_11, %c0_12], %12 {strides = array<i32>} : memref<8x256xf32, #tpu.memory_space<vmem>>, vector<8x256xf32>,
    } else {
    }
    %c0 = arith.constant 0 : index
    %c0_1 = arith.constant 0 : index
    %3 = vector.load %arg7[%c0, %c0_1] : memref<8x256xf32, #tpu.memory_space<vmem>>, vector<8x256xf32>
    %c0_2 = arith.constant 0 : index
    %c0_3 = arith.constant 0 : index
    %4 = vector.load %arg3[%c0_2, %c0_3] : memref<8x1664xbf16, #tpu.memory_space<vmem>>, vector<8x1664xbf16>
    %c0_4 = arith.constant 0 : index
    %c0_5 = arith.constant 0 : index
    %5 = vector.load %arg4[%c0_4, %c0_5] : memref<1664x256xbf16, #tpu.memory_space<vmem>>, vector<1664x256xbf16>
    %cst = arith.constant dense<0.000000e+00> : vector<8x256xf32>
    %6 = tpu.matmul %4, %5, %cst {dimension_numbers = #tpu.dot_dimension_numbers<[1], [0], [0], [1], [0, 0, 1, 1], [], []>} : vector<8x1664xbf16>, vector<1664x256xbf16>, vector<8x256xf32> -> vector<8x256xf32>
    %7 = arith.addf %3, %6 : vector<8x256xf32>
    %c0_6 = arith.constant 0 : index
    %c0_7 = arith.constant 0 : index
    %8 = vector.load %arg7[%c0_6, %c0_7] : memref<8x256xf32, #tpu.memory_space<vmem>>, vector<8x256xf32>
    tpu.vector_store %arg7[%c0_6, %c0_7], %7 {strides = array<i32>} : memref<8x256xf32, #tpu.memory_space<vmem>>, vector<8x256xf32>,
    %c0_i32_8 = arith.constant 0 : i32
    %9 = arith.cmpi eq, %arg2, %c0_i32_8 : i32
    %10 = arith.extui %9 : i1 to i32
    %c0_i32_9 = arith.constant 0 : i32
    %11 = arith.cmpi ne, %10, %c0_i32_9 : i32
    scf.if %11 {
      %c0_10 = arith.constant 0 : index
      %c0_11 = arith.constant 0 : index
      %12 = vector.load %arg7[%c0_10, %c0_11] : memref<8x256xf32, #tpu.memory_space<vmem>>, vector<8x256xf32>
      %c0_12 = arith.constant 0 : index
      %c0_13 = arith.constant 0 : index
      %13 = vector.load %arg5[%c0_12, %c0_13] : memref<1x256xf32, #tpu.memory_space<vmem>>, vector<1x256xf32>
      %14 = vector.broadcast %13 : vector<1x256xf32> to vector<8x256xf32>
      %15 = arith.addf %12, %14 : vector<8x256xf32>
      %cst_14 = arith.constant 0.000000e+00 : f32
      %16 = vector.broadcast %cst_14 : f32 to vector<8x256xf32>
      %17 = arith.cmpf oge, %15, %16 : vector<8x256xf32>
      %cst_15 = arith.constant 0.00999999977 : f32
      %18 = vector.broadcast %cst_15 : f32 to vector<8x256xf32>
      %19 = arith.mulf %18, %15 : vector<8x256xf32>
      %20 = arith.select %17, %15, %19 : vector<8x256xi1>, vector<8x256xf32>
      %c0_16 = arith.constant 0 : index
      %c0_17 = arith.constant 0 : index
      %21 = vector.load %arg6[%c0_16, %c0_17] : memref<8x256xf32, #tpu.memory_space<vmem>>, vector<8x256xf32>
      tpu.vector_store %arg6[%c0_16, %c0_17], %20 {strides = array<i32>} : memref<8x256xf32, #tpu.memory_space<vmem>>, vector<8x256xf32>,
    } else {
    }
    return
  }
  func.func @transform_0(%arg0: i32, %arg1: i32, %arg2: i32) -> (i32, i32) {
    %c0_i32 = arith.constant 0 : i32
    return %arg0, %arg2 : i32, i32
  }
  func.func @transform_1(%arg0: i32, %arg1: i32, %arg2: i32) -> (i32, i32) {
    %c0_i32 = arith.constant 0 : i32
    return %arg2, %arg1 : i32, i32
  }
  func.func @transform_2(%arg0: i32, %arg1: i32, %arg2: i32) -> (i32, i32) {
    %c0_i32 = arith.constant 0 : i32
    %c0_i32_0 = arith.constant 0 : i32
    return %c0_i32, %arg1 : i32, i32
  }
  func.func @transform_3(%arg0: i32, %arg1: i32, %arg2: i32) -> (i32, i32) {
    %c0_i32 = arith.constant 0 : i32
    return %arg0, %arg1 : i32, i32
  }
}

</mosaic_0001>

<llo_original>
// kernel: resnet_modified_medium_forward.1
$region0: #{resnet_modified_medium_forward.1}
  #allocation0 [shape = 'u32[]', space=smem, size = 0x4, offset = 0x4, fixed_abs, tag = 'smem constant byte address 0x4 - core index']
  #allocation1 [shape = 'u32[144,128]{1,0:T(1,128)}', space=vmem, size = 0x12000, scoped, tag = 'internal scratch']
  #allocation2 [shape = 'f32[8,256]{1,0:T(8,128)}', space=vmem, size = 0x2000, scoped, tag = 'scratch operand']
  %s0 = inlined_call_operand.vmem [shape: bf16[8,1664], index: 0, kind: input, shape index: {}]
  %s1 = inlined_call_operand.vmem [shape: bf16[1664,256], index: 1, kind: input, shape index: {}]
  %s2 = inlined_call_operand.vmem [shape: f32[1,256], index: 2, kind: input, shape index: {}]
  %s3 = inlined_call_operand.vmem [shape: f32[8,256], index: 3, kind: output, shape index: {}]
  %s4 = sld [smem:[#allocation0]]
  $region30: #{resnet_modified_medium_forward.1} parent=0
    _
  %s6 = ssub.s32 1, %s4
  %s7 = scalar_select 0, %s6, %s4
  // Predicated region
  $region2: #{resnet_modified_medium_forward.1} parent=0 // pred_check
    _
  $region3: #{resnet_modified_medium_forward.1} parent=0 // pred_check_branch
    %9 = sbr.rel (0) target = $region5
  $region4: #{resnet_modified_medium_forward.1} parent=0 // pred_region
    _
  $region5: #{resnet_modified_medium_forward.1} parent=0 // pred_fallthru
    _
  // Predicated region
  $region6: #{resnet_modified_medium_forward.1} parent=0 // pred_check
    _
  $region7: #{resnet_modified_medium_forward.1} parent=0 // pred_check_branch
    %11 = sbr.rel (0) target = $region9
  $region8: #{resnet_modified_medium_forward.1} parent=0 // pred_region
    _
  $region9: #{resnet_modified_medium_forward.1} parent=0 // pred_fallthru
    _
  // Predicated region
  $region10: #{resnet_modified_medium_forward.1} parent=0 // pred_check
    _
  $region11: #{resnet_modified_medium_forward.1} parent=0 // pred_check_branch
    %13 = sbr.rel (0) target = $region13
  $region12: #{resnet_modified_medium_forward.1} parent=0 // pred_region
    _
  $region13: #{resnet_modified_medium_forward.1} parent=0 // pred_fallthru
    _
  %p15 = scmp.eq.s32.totalorder 0, 0
  // Predicated region
  $region14: #{resnet_modified_medium_forward.1} parent=0 // pred_check
    %p16 = pneg %p15
  $region15: #{resnet_modified_medium_forward.1} parent=0 // pred_check_branch
    %18 = sbr.rel (%p16) target = $region17
  $region16: #{resnet_modified_medium_forward.1} parent=0 // pred_region
    %19 = vst [vmem:[#allocation2] sm:$0xff] 0.0
    %20 = vst [vmem:[#allocation2 + $0x8] sm:$0xff] 0.0
  $region17: #{resnet_modified_medium_forward.1} parent=0 // pred_fallthru
    _
  %v21 = vld [vmem:[#allocation2] sm:$0xff]
  %v22 = vld [vmem:[#allocation2 + $0x8] sm:$0xff]
  %v23 = vld [vmem:[%s0] sm:$0xff]
  %v24 = vld [vmem:[%s0 + $0x8] sm:$0xff]
  %v25 = vld [vmem:[%s0 + $0x10] sm:$0xff]
  %v26 = vld [vmem:[%s0 + $0x18] sm:$0xff]
  %v27 = vld [vmem:[%s0 + $0x20] sm:$0xff]
  %v28 = vld [vmem:[%s0 + $0x28] sm:$0xff]
  %v29 = vld [vmem:[%s0 + $0x30] sm:$0xf]
  %v30 = vld [vmem:[%s1] sm:$0xff]
  %v31 = vld [vmem:[%s1 + $0x8] sm:$0xff]
  %v32 = vld [vmem:[%s1 + $0x10] sm:$0xff]
  %v33 = vld [vmem:[%s1 + $0x18] sm:$0xff]
  %v34 = vld [vmem:[%s1 + $0x20] sm:$0xff]
  %v35 = vld [vmem:[%s1 + $0x28] sm:$0xff]
  %v36 = vld [vmem:[%s1 + $0x30] sm:$0xff]
  %v37 = vld [vmem:[%s1 + $0x38] sm:$0xff]
  %v38 = vld [vmem:[%s1 + $0x40] sm:$0xff]
  %v39 = vld [vmem:[%s1 + $0x48] sm:$0xff]
  %v40 = vld [vmem:[%s1 + $0x50] sm:$0xff]
  %v41 = vld [vmem:[%s1 + $0x58] sm:$0xff]
  %v42 = vld [vmem:[%s1 + $0x60] sm:$0xff]
  %v43 = vld [vmem:[%s1 + $0x68] sm:$0xff]
  %v44 = vld [vmem:[%s1 + $0x70] sm:$0xff]
  %v45 = vld [vmem:[%s1 + $0x78] sm:$0xff]
  %v46 = vld [vmem:[%s1 + $0x80] sm:$0xff]
  %v47 = vld [vmem:[%s1 + $0x88] sm:$0xff]
  %v48 = vld [vmem:[%s1 + $0x90] sm:$0xff]
  %v49 = vld [vmem:[%s1 + $0x98] sm:$0xff]
  %v50 = vld [vmem:[%s1 + $0xa0] sm:$0xff]
  %v51 = vld [vmem:[%s1 + $0xa8] sm:$0xff]
  %v52 = vld [vmem:[%s1 + $0xb0] sm:$0xff]
  %v53 = vld [vmem:[%s1 + $0xb8] sm:$0xff]
  %v54 = vld [vmem:[%s1 + $0xc0] sm:$0xff]
  %v55 = vld [vmem:[%s1 + $0xc8] sm:$0xff]
  %v56 = vld [vmem:[%s1 + $0xd0] sm:$0xff]
  %v57 = vld [vmem:[%s1 + $0xd8] sm:$0xff]
  %v58 = vld [vmem:[%s1 + $0xe0] sm:$0xff]
  %v59 = vld [vmem:[%s1 + $0xe8] sm:$0xff]
  %v60 = vld [vmem:[%s1 + $0xf0] sm:$0xff]
  %v61 = vld [vmem:[%s1 + $0xf8] sm:$0xff]
  %v62 = vld [vmem:[%s1 + $0x100] sm:$0xff]
  %v63 = vld [vmem:[%s1 + $0x108] sm:$0xff]
  %v64 = vld [vmem:[%s1 + $0x110] sm:$0xff]
  %v65 = vld [vmem:[%s1 + $0x118] sm:$0xff]
  %v66 = vld [vmem:[%s1 + $0x120] sm:$0xff]
  %v67 = vld [vmem:[%s1 + $0x128] sm:$0xff]
  %v68 = vld [vmem:[%s1 + $0x130] sm:$0xff]
  %v69 = vld [vmem:[%s1 + $0x138] sm:$0xff]
  %v70 = vld [vmem:[%s1 + $0x140] sm:$0xff]
  %v71 = vld [vmem:[%s1 + $0x148] sm:$0xff]
  %v72 = vld [vmem:[%s1 + $0x150] sm:$0xff]
  %v73 = vld [vmem:[%s1 + $0x158] sm:$0xff]
  %v74 = vld [vmem:[%s1 + $0x160] sm:$0xff]
  %v75 = vld [vmem:[%s1 + $0x168] sm:$0xff]
  %v76 = vld [vmem:[%s1 + $0x170] sm:$0xff]
  %v77 = vld [vmem:[%s1 + $0x178] sm:$0xff]
  %v78 = vld [vmem:[%s1 + $0x180] sm:$0xff]
  %v79 = vld [vmem:[%s1 + $0x188] sm:$0xff]
  %v80 = vld [vmem:[%s1 + $0x190] sm:$0xff]
  %v81 = vld [vmem:[%s1 + $0x198] sm:$0xff]
  %v82 = vld [vmem:[%s1 + $0x1a0] sm:$0xff]
  %v83 = vld [vmem:[%s1 + $0x1a8] sm:$0xff]
  %v84 = vld [vmem:[%s1 + $0x1b0] sm:$0xff]
  %v85 = vld [vmem:[%s1 + $0x1b8] sm:$0xff]
  %v86 = vld [vmem:[%s1 + $0x1c0] sm:$0xff]
  %v87 = vld [vmem:[%s1 + $0x1c8] sm:$0xff]
  %v88 = vld [vmem:[%s1 + $0x1d0] sm:$0xff]
  %v89 = vld [vmem:[%s1 + $0x1d8] sm:$0xff]
  %v90 = vld [vmem:[%s1 + $0x1e0] sm:$0xff]
  %v91 = vld [vmem:[%s1 + $0x1e8] sm:$0xff]
  %v92 = vld [vmem:[%s1 + $0x1f0] sm:$0xff]
  %v93 = vld [vmem:[%s1 + $0x1f8] sm:$0xff]
  %v94 = vld [vmem:[%s1 + $0x200] sm:$0xff]
  %v95 = vld [vmem:[%s1 + $0x208] sm:$0xff]
  %v96 = vld [vmem:[%s1 + $0x210] sm:$0xff]
  %v97 = vld [vmem:[%s1 + $0x218] sm:$0xff]
  %v98 = vld [vmem:[%s1 + $0x220] sm:$0xff]
  %v99 = vld [vmem:[%s1 + $0x228] sm:$0xff]
  %v100 = vld [vmem:[%s1 + $0x230] sm:$0xff]
  %v101 = vld [vmem:[%s1 + $0x238] sm:$0xff]
  %v102 = vld [vmem:[%s1 + $0x240] sm:$0xff]
  %v103 = vld [vmem:[%s1 + $0x248] sm:$0xff]
  %v104 = vld [vmem:[%s1 + $0x250] sm:$0xff]
  %v105 = vld [vmem:[%s1 + $0x258] sm:$0xff]
  %v106 = vld [vmem:[%s1 + $0x260] sm:$0xff]
  %v107 = vld [vmem:[%s1 + $0x268] sm:$0xff]
  %v108 = vld [vmem:[%s1 + $0x270] sm:$0xff]
  %v109 = vld [vmem:[%s1 + $0x278] sm:$0xff]
  %v110 = vld [vmem:[%s1 + $0x280] sm:$0xff]
  %v111 = vld [vmem:[%s1 + $0x288] sm:$0xff]
  %v112 = vld [vmem:[%s1 + $0x290] sm:$0xff]
  %v113 = vld [vmem:[%s1 + $0x298] sm:$0xff]
  %v114 = vld [vmem:[%s1 + $0x2a0] sm:$0xff]
  %v115 = vld [vmem:[%s1 + $0x2a8] sm:$0xff]
  %v116 = vld [vmem:[%s1 + $0x2b0] sm:$0xff]
  %v117 = vld [vmem:[%s1 + $0x2b8] sm:$0xff]
  %v118 = vld [vmem:[%s1 + $0x2c0] sm:$0xff]
  %v119 = vld [vmem:[%s1 + $0x2c8] sm:$0xff]
  %v120 = vld [vmem:[%s1 + $0x2d0] sm:$0xff]
  %v121 = vld [vmem:[%s1 + $0x2d8] sm:$0xff]
  %v122 = vld [vmem:[%s1 + $0x2e0] sm:$0xff]
  %v123 = vld [vmem:[%s1 + $0x2e8] sm:$0xff]
  %v124 = vld [vmem:[%s1 + $0x2f0] sm:$0xff]
  %v125 = vld [vmem:[%s1 + $0x2f8] sm:$0xff]
  %v126 = vld [vmem:[%s1 + $0x300] sm:$0xff]
  %v127 = vld [vmem:[%s1 + $0x308] sm:$0xff]
  %v128 = vld [vmem:[%s1 + $0x310] sm:$0xff]
  %v129 = vld [vmem:[%s1 + $0x318] sm:$0xff]
  %v130 = vld [vmem:[%s1 + $0x320] sm:$0xff]
  %v131 = vld [vmem:[%s1 + $0x328] sm:$0xff]
  %v132 = vld [vmem:[%s1 + $0x330] sm:$0xff]
  %v133 = vld [vmem:[%s1 + $0x338] sm:$0xff]
  %v134 = vld [vmem:[%s1 + $0x340] sm:$0xff]
  %v135 = vld [vmem:[%s1 + $0x348] sm:$0xff]
  %v136 = vld [vmem:[%s1 + $0x350] sm:$0xff]
  %v137 = vld [vmem:[%s1 + $0x358] sm:$0xff]
  %v138 = vld [vmem:[%s1 + $0x360] sm:$0xff]
  %v139 = vld [vmem:[%s1 + $0x368] sm:$0xff]
  %v140 = vld [vmem:[%s1 + $0x370] sm:$0xff]
  %v141 = vld [vmem:[%s1 + $0x378] sm:$0xff]
  %v142 = vld [vmem:[%s1 + $0x380] sm:$0xff]
  %v143 = vld [vmem:[%s1 + $0x388] sm:$0xff]
  %v144 = vld [vmem:[%s1 + $0x390] sm:$0xff]
  %v145 = vld [vmem:[%s1 + $0x398] sm:$0xff]
  %v146 = vld [vmem:[%s1 + $0x3a0] sm:$0xff]
  %v147 = vld [vmem:[%s1 + $0x3a8] sm:$0xff]
  %v148 = vld [vmem:[%s1 + $0x3b0] sm:$0xff]
  %v149 = vld [vmem:[%s1 + $0x3b8] sm:$0xff]
  %v150 = vld [vmem:[%s1 + $0x3c0] sm:$0xff]
  %v151 = vld [vmem:[%s1 + $0x3c8] sm:$0xff]
  %v152 = vld [vmem:[%s1 + $0x3d0] sm:$0xff]
  %v153 = vld [vmem:[%s1 + $0x3d8] sm:$0xff]
  %v154 = vld [vmem:[%s1 + $0x3e0] sm:$0xff]
  %v155 = vld [vmem:[%s1 + $0x3e8] sm:$0xff]
  %v156 = vld [vmem:[%s1 + $0x3f0] sm:$0xff]
  %v157 = vld [vmem:[%s1 + $0x3f8] sm:$0xff]
  %v158 = vld [vmem:[%s1 + $0x400] sm:$0xff]
  %v159 = vld [vmem:[%s1 + $0x408] sm:$0xff]
  %v160 = vld [vmem:[%s1 + $0x410] sm:$0xff]
  %v161 = vld [vmem:[%s1 + $0x418] sm:$0xff]
  %v162 = vld [vmem:[%s1 + $0x420] sm:$0xff]
  %v163 = vld [vmem:[%s1 + $0x428] sm:$0xff]
  %v164 = vld [vmem:[%s1 + $0x430] sm:$0xff]
  %v165 = vld [vmem:[%s1 + $0x438] sm:$0xff]
  %v166 = vld [vmem:[%s1 + $0x440] sm:$0xff]
  %v167 = vld [vmem:[%s1 + $0x448] sm:$0xff]
  %v168 = vld [vmem:[%s1 + $0x450] sm:$0xff]
  %v169 = vld [vmem:[%s1 + $0x458] sm:$0xff]
  %v170 = vld [vmem:[%s1 + $0x460] sm:$0xff]
  %v171 = vld [vmem:[%s1 + $0x468] sm:$0xff]
  %v172 = vld [vmem:[%s1 + $0x470] sm:$0xff]
  %v173 = vld [vmem:[%s1 + $0x478] sm:$0xff]
  %v174 = vld [vmem:[%s1 + $0x480] sm:$0xff]
  %v175 = vld [vmem:[%s1 + $0x488] sm:$0xff]
  %v176 = vld [vmem:[%s1 + $0x490] sm:$0xff]
  %v177 = vld [vmem:[%s1 + $0x498] sm:$0xff]
  %v178 = vld [vmem:[%s1 + $0x4a0] sm:$0xff]
  %v179 = vld [vmem:[%s1 + $0x4a8] sm:$0xff]
  %v180 = vld [vmem:[%s1 + $0x4b0] sm:$0xff]
  %v181 = vld [vmem:[%s1 + $0x4b8] sm:$0xff]
  %v182 = vld [vmem:[%s1 + $0x4c0] sm:$0xff]
  %v183 = vld [vmem:[%s1 + $0x4c8] sm:$0xff]
  %v184 = vld [vmem:[%s1 + $0x4d0] sm:$0xff]
  %v185 = vld [vmem:[%s1 + $0x4d8] sm:$0xff]
  %v186 = vld [vmem:[%s1 + $0x4e0] sm:$0xff]
  %v187 = vld [vmem:[%s1 + $0x4e8] sm:$0xff]
  %v188 = vld [vmem:[%s1 + $0x4f0] sm:$0xff]
  %v189 = vld [vmem:[%s1 + $0x4f8] sm:$0xff]
  %v190 = vld [vmem:[%s1 + $0x500] sm:$0xff]
  %v191 = vld [vmem:[%s1 + $0x508] sm:$0xff]
  %v192 = vld [vmem:[%s1 + $0x510] sm:$0xff]
  %v193 = vld [vmem:[%s1 + $0x518] sm:$0xff]
  %v194 = vld [vmem:[%s1 + $0x520] sm:$0xff]
  %v195 = vld [vmem:[%s1 + $0x528] sm:$0xff]
  %v196 = vld [vmem:[%s1 + $0x530] sm:$0xff]
  %v197 = vld [vmem:[%s1 + $0x538] sm:$0xff]
  %v198 = vld [vmem:[%s1 + $0x540] sm:$0xff]
  %v199 = vld [vmem:[%s1 + $0x548] sm:$0xff]
  %v200 = vld [vmem:[%s1 + $0x550] sm:$0xff]
  %v201 = vld [vmem:[%s1 + $0x558] sm:$0xff]
  %v202 = vld [vmem:[%s1 + $0x560] sm:$0xff]
  %v203 = vld [vmem:[%s1 + $0x568] sm:$0xff]
  %v204 = vld [vmem:[%s1 + $0x570] sm:$0xff]
  %v205 = vld [vmem:[%s1 + $0x578] sm:$0xff]
  %v206 = vld [vmem:[%s1 + $0x580] sm:$0xff]
  %v207 = vld [vmem:[%s1 + $0x588] sm:$0xff]
  %v208 = vld [vmem:[%s1 + $0x590] sm:$0xff]
  %v209 = vld [vmem:[%s1 + $0x598] sm:$0xff]
  %v210 = vld [vmem:[%s1 + $0x5a0] sm:$0xff]
  %v211 = vld [vmem:[%s1 + $0x5a8] sm:$0xff]
  %v212 = vld [vmem:[%s1 + $0x5b0] sm:$0xff]
  %v213 = vld [vmem:[%s1 + $0x5b8] sm:$0xff]
  %v214 = vld [vmem:[%s1 + $0x5c0] sm:$0xff]
  %v215 = vld [vmem:[%s1 + $0x5c8] sm:$0xff]
  %v216 = vld [vmem:[%s1 + $0x5d0] sm:$0xff]
  %v217 = vld [vmem:[%s1 + $0x5d8] sm:$0xff]
  %v218 = vld [vmem:[%s1 + $0x5e0] sm:$0xff]
  %v219 = vld [vmem:[%s1 + $0x5e8] sm:$0xff]
  %v220 = vld [vmem:[%s1 + $0x5f0] sm:$0xff]
  %v221 = vld [vmem:[%s1 + $0x5f8] sm:$0xff]
  %v222 = vld [vmem:[%s1 + $0x600] sm:$0xff]
  %v223 = vld [vmem:[%s1 + $0x608] sm:$0xff]
  %v224 = vld [vmem:[%s1 + $0x610] sm:$0xff]
  %v225 = vld [vmem:[%s1 + $0x618] sm:$0xff]
  %v226 = vld [vmem:[%s1 + $0x620] sm:$0xff]
  %v227 = vld [vmem:[%s1 + $0x628] sm:$0xff]
  %v228 = vld [vmem:[%s1 + $0x630] sm:$0xff]
  %v229 = vld [vmem:[%s1 + $0x638] sm:$0xff]
  %v230 = vld [vmem:[%s1 + $0x640] sm:$0xff]
  %v231 = vld [vmem:[%s1 + $0x648] sm:$0xff]
  %v232 = vld [vmem:[%s1 + $0x650] sm:$0xff]
  %v233 = vld [vmem:[%s1 + $0x658] sm:$0xff]
  %v234 = vld [vmem:[%s1 + $0x660] sm:$0xff]
  %v235 = vld [vmem:[%s1 + $0x668] sm:$0xff]
  %v236 = vld [vmem:[%s1 + $0x670] sm:$0xff]
  %v237 = vld [vmem:[%s1 + $0x678] sm:$0xff]
  %v245 = vunpack.c.l.b16 %v23
  %v246 = vunpack.c.h.b16 %v23
  %v247 = vunpack.c.l.b16 %v24
  %v248 = vunpack.c.h.b16 %v24
  %v249 = vunpack.c.l.b16 %v25
  %v250 = vunpack.c.h.b16 %v25
  %v251 = vunpack.c.l.b16 %v26
  %v252 = vunpack.c.h.b16 %v26
  %v253 = vunpack.c.l.b16 %v27
  %v254 = vunpack.c.h.b16 %v27
  %v255 = vunpack.c.l.b16 %v28
  %v256 = vunpack.c.h.b16 %v28
  %v257 = vunpack.c.l.b16 %v29
  %v258 = vpack.c.b16 %v245, %v245
  %v259 = vpack.c.b16 %v246, %v246
  %v260 = vpack.c.b16 %v247, %v247
  %v261 = vpack.c.b16 %v248, %v248
  %v262 = vpack.c.b16 %v249, %v249
  %v263 = vpack.c.b16 %v250, %v250
  %v264 = vpack.c.b16 %v251, %v251
  %v265 = vpack.c.b16 %v252, %v252
  %v266 = vpack.c.b16 %v253, %v253
  %v267 = vpack.c.b16 %v254, %v254
  %v268 = vpack.c.b16 %v255, %v255
  %v269 = vpack.c.b16 %v256, %v256
  %v270 = vpack.c.b16 %v257, %v257
  %v492 = vunpack.c.l.b16 %v30
  %v493 = vunpack.c.h.b16 %v30
  %v494 = vunpack.c.l.b16 %v31
  %v495 = vunpack.c.h.b16 %v31
  %v496 = vunpack.c.l.b16 %v32
  %v497 = vunpack.c.h.b16 %v32
  %v498 = vunpack.c.l.b16 %v33
  %v499 = vunpack.c.h.b16 %v33
  %v500 = vunpack.c.l.b16 %v34
  %v501 = vunpack.c.h.b16 %v34
  %v502 = vunpack.c.l.b16 %v35
  %v503 = vunpack.c.h.b16 %v35
  %v504 = vunpack.c.l.b16 %v36
  %v505 = vunpack.c.h.b16 %v36
  %v506 = vunpack.c.l.b16 %v37
  %v507 = vunpack.c.h.b16 %v37
  %v508 = vunpack.c.l.b16 %v38
  %v509 = vunpack.c.h.b16 %v38
  %v510 = vunpack.c.l.b16 %v39
  %v511 = vunpack.c.h.b16 %v39
  %v512 = vunpack.c.l.b16 %v40
  %v513 = vunpack.c.h.b16 %v40
  %v514 = vunpack.c.l.b16 %v41
  %v515 = vunpack.c.h.b16 %v41
  %v516 = vunpack.c.l.b16 %v42
  %v517 = vunpack.c.h.b16 %v42
  %v518 = vunpack.c.l.b16 %v43
  %v519 = vunpack.c.h.b16 %v43
  %v520 = vunpack.c.l.b16 %v44
  %v521 = vunpack.c.h.b16 %v44
  %v522 = vunpack.c.l.b16 %v45
  %v523 = vunpack.c.h.b16 %v45
  %v524 = vunpack.c.l.b16 %v46
  %v525 = vunpack.c.h.b16 %v46
  %v526 = vunpack.c.l.b16 %v47
  %v527 = vunpack.c.h.b16 %v47
  %v528 = vunpack.c.l.b16 %v48
  %v529 = vunpack.c.h.b16 %v48
  %v530 = vunpack.c.l.b16 %v49
  %v531 = vunpack.c.h.b16 %v49
  %v532 = vunpack.c.l.b16 %v50
  %v533 = vunpack.c.h.b16 %v50
  %v534 = vunpack.c.l.b16 %v51
  %v535 = vunpack.c.h.b16 %v51
  %v536 = vunpack.c.l.b16 %v52
  %v537 = vunpack.c.h.b16 %v52
  %v538 = vunpack.c.l.b16 %v53
  %v539 = vunpack.c.h.b16 %v53
  %v540 = vunpack.c.l.b16 %v54
  %v541 = vunpack.c.h.b16 %v54
  %v542 = vunpack.c.l.b16 %v55
  %v543 = vunpack.c.h.b16 %v55
  %v544 = vunpack.c.l.b16 %v56
  %v545 = vunpack.c.h.b16 %v56
  %v546 = vunpack.c.l.b16 %v57
  %v547 = vunpack.c.h.b16 %v57
  %v548 = vunpack.c.l.b16 %v58
  %v549 = vunpack.c.h.b16 %v58
  %v550 = vunpack.c.l.b16 %v59
  %v551 = vunpack.c.h.b16 %v59
  %v552 = vunpack.c.l.b16 %v60
  %v553 = vunpack.c.h.b16 %v60
  %v554 = vunpack.c.l.b16 %v61
  %v555 = vunpack.c.h.b16 %v61
  %v556 = vunpack.c.l.b16 %v62
  %v557 = vunpack.c.h.b16 %v62
  %v558 = vunpack.c.l.b16 %v63
  %v559 = vunpack.c.h.b16 %v63
  %v560 = vunpack.c.l.b16 %v64
  %v561 = vunpack.c.h.b16 %v64
  %v562 = vunpack.c.l.b16 %v65
  %v563 = vunpack.c.h.b16 %v65
  %v564 = vunpack.c.l.b16 %v66
  %v565 = vunpack.c.h.b16 %v66
  %v566 = vunpack.c.l.b16 %v67
  %v567 = vunpack.c.h.b16 %v67
  %v568 = vunpack.c.l.b16 %v68
  %v569 = vunpack.c.h.b16 %v68
  %v570 = vunpack.c.l.b16 %v69
  %v571 = vunpack.c.h.b16 %v69
  %v572 = vunpack.c.l.b16 %v70
  %v573 = vunpack.c.h.b16 %v70
  %v574 = vunpack.c.l.b16 %v71
  %v575 = vunpack.c.h.b16 %v71
  %v576 = vunpack.c.l.b16 %v72
  %v577 = vunpack.c.h.b16 %v72
  %v578 = vunpack.c.l.b16 %v73
  %v579 = vunpack.c.h.b16 %v73
  %v580 = vunpack.c.l.b16 %v74
  %v581 = vunpack.c.h.b16 %v74
  %v582 = vunpack.c.l.b16 %v75
  %v583 = vunpack.c.h.b16 %v75
  %v584 = vunpack.c.l.b16 %v76
  %v585 = vunpack.c.h.b16 %v76
  %v586 = vunpack.c.l.b16 %v77
  %v587 = vunpack.c.h.b16 %v77
  %v588 = vunpack.c.l.b16 %v78
  %v589 = vunpack.c.h.b16 %v78
  %v590 = vunpack.c.l.b16 %v79
  %v591 = vunpack.c.h.b16 %v79
  %v592 = vunpack.c.l.b16 %v80
  %v593 = vunpack.c.h.b16 %v80
  %v594 = vunpack.c.l.b16 %v81
  %v595 = vunpack.c.h.b16 %v81
  %v596 = vunpack.c.l.b16 %v82
  %v597 = vunpack.c.h.b16 %v82
  %v598 = vunpack.c.l.b16 %v83
  %v599 = vunpack.c.h.b16 %v83
  %v600 = vunpack.c.l.b16 %v84
  %v601 = vunpack.c.h.b16 %v84
  %v602 = vunpack.c.l.b16 %v85
  %v603 = vunpack.c.h.b16 %v85
  %v604 = vunpack.c.l.b16 %v86
  %v605 = vunpack.c.h.b16 %v86
  %v606 = vunpack.c.l.b16 %v87
  %v607 = vunpack.c.h.b16 %v87
  %v608 = vunpack.c.l.b16 %v88
  %v609 = vunpack.c.h.b16 %v88
  %v610 = vunpack.c.l.b16 %v89
  %v611 = vunpack.c.h.b16 %v89
  %v612 = vunpack.c.l.b16 %v90
  %v613 = vunpack.c.h.b16 %v90
  %v614 = vunpack.c.l.b16 %v91
  %v615 = vunpack.c.h.b16 %v91
  %v616 = vunpack.c.l.b16 %v92
  %v617 = vunpack.c.h.b16 %v92
  %v618 = vunpack.c.l.b16 %v93
  %v619 = vunpack.c.h.b16 %v93
  %v620 = vunpack.c.l.b16 %v94
  %v621 = vunpack.c.h.b16 %v94
  %v622 = vunpack.c.l.b16 %v95
  %v623 = vunpack.c.h.b16 %v95
  %v624 = vunpack.c.l.b16 %v96
  %v625 = vunpack.c.h.b16 %v96
  %v626 = vunpack.c.l.b16 %v97
  %v627 = vunpack.c.h.b16 %v97
  %v628 = vunpack.c.l.b16 %v98
  %v629 = vunpack.c.h.b16 %v98
  %v630 = vunpack.c.l.b16 %v99
  %v631 = vunpack.c.h.b16 %v99
  %v632 = vunpack.c.l.b16 %v100
  %v633 = vunpack.c.h.b16 %v100
  %v634 = vunpack.c.l.b16 %v101
  %v635 = vunpack.c.h.b16 %v101
  %v636 = vunpack.c.l.b16 %v102
  %v637 = vunpack.c.h.b16 %v102
  %v638 = vunpack.c.l.b16 %v103
  %v639 = vunpack.c.h.b16 %v103
  %v640 = vunpack.c.l.b16 %v104
  %v641 = vunpack.c.h.b16 %v104
  %v642 = vunpack.c.l.b16 %v105
  %v643 = vunpack.c.h.b16 %v105
  %v644 = vunpack.c.l.b16 %v106
  %v645 = vunpack.c.h.b16 %v106
  %v646 = vunpack.c.l.b16 %v107
  %v647 = vunpack.c.h.b16 %v107
  %v648 = vunpack.c.l.b16 %v108
  %v649 = vunpack.c.h.b16 %v108
  %v650 = vunpack.c.l.b16 %v109
  %v651 = vunpack.c.h.b16 %v109
  %v652 = vunpack.c.l.b16 %v110
  %v653 = vunpack.c.h.b16 %v110
  %v654 = vunpack.c.l.b16 %v111
  %v655 = vunpack.c.h.b16 %v111
  %v656 = vunpack.c.l.b16 %v112
  %v657 = vunpack.c.h.b16 %v112
  %v658 = vunpack.c.l.b16 %v113
  %v659 = vunpack.c.h.b16 %v113
  %v660 = vunpack.c.l.b16 %v114
  %v661 = vunpack.c.h.b16 %v114
  %v662 = vunpack.c.l.b16 %v115
  %v663 = vunpack.c.h.b16 %v115
  %v664 = vunpack.c.l.b16 %v116
  %v665 = vunpack.c.h.b16 %v116
  %v666 = vunpack.c.l.b16 %v117
  %v667 = vunpack.c.h.b16 %v117
  %v668 = vunpack.c.l.b16 %v118
  %v669 = vunpack.c.h.b16 %v118
  %v670 = vunpack.c.l.b16 %v119
  %v671 = vunpack.c.h.b16 %v119
  %v672 = vunpack.c.l.b16 %v120
  %v673 = vunpack.c.h.b16 %v120
  %v674 = vunpack.c.l.b16 %v121
  %v675 = vunpack.c.h.b16 %v121
  %v676 = vunpack.c.l.b16 %v122
  %v677 = vunpack.c.h.b16 %v122
  %v678 = vunpack.c.l.b16 %v123
  %v679 = vunpack.c.h.b16 %v123
  %v680 = vunpack.c.l.b16 %v124
  %v681 = vunpack.c.h.b16 %v124
  %v682 = vunpack.c.l.b16 %v125
  %v683 = vunpack.c.h.b16 %v125
  %v684 = vunpack.c.l.b16 %v126
  %v685 = vunpack.c.h.b16 %v126
  %v686 = vunpack.c.l.b16 %v127
  %v687 = vunpack.c.h.b16 %v127
  %v688 = vunpack.c.l.b16 %v128
  %v689 = vunpack.c.h.b16 %v128
  %v690 = vunpack.c.l.b16 %v129
  %v691 = vunpack.c.h.b16 %v129
  %v692 = vunpack.c.l.b16 %v130
  %v693 = vunpack.c.h.b16 %v130
  %v694 = vunpack.c.l.b16 %v131
  %v695 = vunpack.c.h.b16 %v131
  %v696 = vunpack.c.l.b16 %v132
  %v697 = vunpack.c.h.b16 %v132
  %v698 = vunpack.c.l.b16 %v133
  %v699 = vunpack.c.h.b16 %v133
  %v700 = vunpack.c.l.b16 %v134
  %v701 = vunpack.c.h.b16 %v134
  %v702 = vunpack.c.l.b16 %v135
  %v703 = vunpack.c.h.b16 %v135
  %v704 = vunpack.c.l.b16 %v136
  %v705 = vunpack.c.h.b16 %v136
  %v706 = vunpack.c.l.b16 %v137
  %v707 = vunpack.c.h.b16 %v137
  %v708 = vunpack.c.l.b16 %v138
  %v709 = vunpack.c.h.b16 %v138
  %v710 = vunpack.c.l.b16 %v139
  %v711 = vunpack.c.h.b16 %v139
  %v712 = vunpack.c.l.b16 %v140
  %v713 = vunpack.c.h.b16 %v140
  %v714 = vunpack.c.l.b16 %v141
  %v715 = vunpack.c.h.b16 %v141
  %v716 = vunpack.c.l.b16 %v142
  %v717 = vunpack.c.h.b16 %v142
  %v718 = vunpack.c.l.b16 %v143
  %v719 = vunpack.c.h.b16 %v143
  %v720 = vunpack.c.l.b16 %v144
  %v721 = vunpack.c.h.b16 %v144
  %v722 = vunpack.c.l.b16 %v145
  %v723 = vunpack.c.h.b16 %v145
  %v724 = vunpack.c.l.b16 %v146
  %v725 = vunpack.c.h.b16 %v146
  %v726 = vunpack.c.l.b16 %v147
  %v727 = vunpack.c.h.b16 %v147
  %v728 = vunpack.c.l.b16 %v148
  %v729 = vunpack.c.h.b16 %v148
  %v730 = vunpack.c.l.b16 %v149
  %v731 = vunpack.c.h.b16 %v149
  %v732 = vunpack.c.l.b16 %v150
  %v733 = vunpack.c.h.b16 %v150
  %v734 = vunpack.c.l.b16 %v151
  %v735 = vunpack.c.h.b16 %v151
  %v736 = vunpack.c.l.b16 %v152
  %v737 = vunpack.c.h.b16 %v152
  %v738 = vunpack.c.l.b16 %v153
  %v739 = vunpack.c.h.b16 %v153
  %v740 = vunpack.c.l.b16 %v154
  %v741 = vunpack.c.h.b16 %v154
  %v742 = vunpack.c.l.b16 %v155
  %v743 = vunpack.c.h.b16 %v155
  %v744 = vunpack.c.l.b16 %v156
  %v745 = vunpack.c.h.b16 %v156
  %v746 = vunpack.c.l.b16 %v157
  %v747 = vunpack.c.h.b16 %v157
  %v748 = vunpack.c.l.b16 %v158
  %v749 = vunpack.c.h.b16 %v158
  %v750 = vunpack.c.l.b16 %v159
  %v751 = vunpack.c.h.b16 %v159
  %v752 = vunpack.c.l.b16 %v160
  %v753 = vunpack.c.h.b16 %v160
  %v754 = vunpack.c.l.b16 %v161
  %v755 = vunpack.c.h.b16 %v161
  %v756 = vunpack.c.l.b16 %v162
  %v757 = vunpack.c.h.b16 %v162
  %v758 = vunpack.c.l.b16 %v163
  %v759 = vunpack.c.h.b16 %v163
  %v760 = vunpack.c.l.b16 %v164
  %v761 = vunpack.c.h.b16 %v164
  %v762 = vunpack.c.l.b16 %v165
  %v763 = vunpack.c.h.b16 %v165
  %v764 = vunpack.c.l.b16 %v166
  %v765 = vunpack.c.h.b16 %v166
  %v766 = vunpack.c.l.b16 %v167
  %v767 = vunpack.c.h.b16 %v167
  %v768 = vunpack.c.l.b16 %v168
  %v769 = vunpack.c.h.b16 %v168
  %v770 = vunpack.c.l.b16 %v169
  %v771 = vunpack.c.h.b16 %v169
  %v772 = vunpack.c.l.b16 %v170
  %v773 = vunpack.c.h.b16 %v170
  %v774 = vunpack.c.l.b16 %v171
  %v775 = vunpack.c.h.b16 %v171
  %v776 = vunpack.c.l.b16 %v172
  %v777 = vunpack.c.h.b16 %v172
  %v778 = vunpack.c.l.b16 %v173
  %v779 = vunpack.c.h.b16 %v173
  %v780 = vunpack.c.l.b16 %v174
  %v781 = vunpack.c.h.b16 %v174
  %v782 = vunpack.c.l.b16 %v175
  %v783 = vunpack.c.h.b16 %v175
  %v784 = vunpack.c.l.b16 %v176
  %v785 = vunpack.c.h.b16 %v176
  %v786 = vunpack.c.l.b16 %v177
  %v787 = vunpack.c.h.b16 %v177
  %v788 = vunpack.c.l.b16 %v178
  %v789 = vunpack.c.h.b16 %v178
  %v790 = vunpack.c.l.b16 %v179
  %v791 = vunpack.c.h.b16 %v179
  %v792 = vunpack.c.l.b16 %v180
  %v793 = vunpack.c.h.b16 %v180
  %v794 = vunpack.c.l.b16 %v181
  %v795 = vunpack.c.h.b16 %v181
  %v796 = vunpack.c.l.b16 %v182
  %v797 = vunpack.c.h.b16 %v182
  %v798 = vunpack.c.l.b16 %v183
  %v799 = vunpack.c.h.b16 %v183
  %v800 = vunpack.c.l.b16 %v184
  %v801 = vunpack.c.h.b16 %v184
  %v802 = vunpack.c.l.b16 %v185
  %v803 = vunpack.c.h.b16 %v185
  %v804 = vunpack.c.l.b16 %v186
  %v805 = vunpack.c.h.b16 %v186
  %v806 = vunpack.c.l.b16 %v187
  %v807 = vunpack.c.h.b16 %v187
  %v808 = vunpack.c.l.b16 %v188
  %v809 = vunpack.c.h.b16 %v188
  %v810 = vunpack.c.l.b16 %v189
  %v811 = vunpack.c.h.b16 %v189
  %v812 = vunpack.c.l.b16 %v190
  %v813 = vunpack.c.h.b16 %v190
  %v814 = vunpack.c.l.b16 %v191
  %v815 = vunpack.c.h.b16 %v191
  %v816 = vunpack.c.l.b16 %v192
  %v817 = vunpack.c.h.b16 %v192
  %v818 = vunpack.c.l.b16 %v193
  %v819 = vunpack.c.h.b16 %v193
  %v820 = vunpack.c.l.b16 %v194
  %v821 = vunpack.c.h.b16 %v194
  %v822 = vunpack.c.l.b16 %v195
  %v823 = vunpack.c.h.b16 %v195
  %v824 = vunpack.c.l.b16 %v196
  %v825 = vunpack.c.h.b16 %v196
  %v826 = vunpack.c.l.b16 %v197
  %v827 = vunpack.c.h.b16 %v197
  %v828 = vunpack.c.l.b16 %v198
  %v829 = vunpack.c.h.b16 %v198
  %v830 = vunpack.c.l.b16 %v199
  %v831 = vunpack.c.h.b16 %v199
  %v832 = vunpack.c.l.b16 %v200
  %v833 = vunpack.c.h.b16 %v200
  %v834 = vunpack.c.l.b16 %v201
  %v835 = vunpack.c.h.b16 %v201
  %v836 = vunpack.c.l.b16 %v202
  %v837 = vunpack.c.h.b16 %v202
  %v838 = vunpack.c.l.b16 %v203
  %v839 = vunpack.c.h.b16 %v203
  %v840 = vunpack.c.l.b16 %v204
  %v841 = vunpack.c.h.b16 %v204
  %v842 = vunpack.c.l.b16 %v205
  %v843 = vunpack.c.h.b16 %v205
  %v844 = vunpack.c.l.b16 %v206
  %v845 = vunpack.c.h.b16 %v206
  %v846 = vunpack.c.l.b16 %v207
  %v847 = vunpack.c.h.b16 %v207
  %v848 = vunpack.c.l.b16 %v208
  %v849 = vunpack.c.h.b16 %v208
  %v850 = vunpack.c.l.b16 %v209
  %v851 = vunpack.c.h.b16 %v209
  %v852 = vunpack.c.l.b16 %v210
  %v853 = vunpack.c.h.b16 %v210
  %v854 = vunpack.c.l.b16 %v211
  %v855 = vunpack.c.h.b16 %v211
  %v856 = vunpack.c.l.b16 %v212
  %v857 = vunpack.c.h.b16 %v212
  %v858 = vunpack.c.l.b16 %v213
  %v859 = vunpack.c.h.b16 %v213
  %v860 = vunpack.c.l.b16 %v214
  %v861 = vunpack.c.h.b16 %v214
  %v862 = vunpack.c.l.b16 %v215
  %v863 = vunpack.c.h.b16 %v215
  %v864 = vunpack.c.l.b16 %v216
  %v865 = vunpack.c.h.b16 %v216
  %v866 = vunpack.c.l.b16 %v217
  %v867 = vunpack.c.h.b16 %v217
  %v868 = vunpack.c.l.b16 %v218
  %v869 = vunpack.c.h.b16 %v218
  %v870 = vunpack.c.l.b16 %v219
  %v871 = vunpack.c.h.b16 %v219
  %v872 = vunpack.c.l.b16 %v220
  %v873 = vunpack.c.h.b16 %v220
  %v874 = vunpack.c.l.b16 %v221
  %v875 = vunpack.c.h.b16 %v221
  %v876 = vunpack.c.l.b16 %v222
  %v877 = vunpack.c.h.b16 %v222
  %v878 = vunpack.c.l.b16 %v223
  %v879 = vunpack.c.h.b16 %v223
  %v880 = vunpack.c.l.b16 %v224
  %v881 = vunpack.c.h.b16 %v224
  %v882 = vunpack.c.l.b16 %v225
  %v883 = vunpack.c.h.b16 %v225
  %v884 = vunpack.c.l.b16 %v226
  %v885 = vunpack.c.h.b16 %v226
  %v886 = vunpack.c.l.b16 %v227
  %v887 = vunpack.c.h.b16 %v227
  %v888 = vunpack.c.l.b16 %v228
  %v889 = vunpack.c.h.b16 %v228
  %v890 = vunpack.c.l.b16 %v229
  %v891 = vunpack.c.h.b16 %v229
  %v892 = vunpack.c.l.b16 %v230
  %v893 = vunpack.c.h.b16 %v230
  %v894 = vunpack.c.l.b16 %v231
  %v895 = vunpack.c.h.b16 %v231
  %v896 = vunpack.c.l.b16 %v232
  %v897 = vunpack.c.h.b16 %v232
  %v898 = vunpack.c.l.b16 %v233
  %v899 = vunpack.c.h.b16 %v233
  %v900 = vunpack.c.l.b16 %v234
  %v901 = vunpack.c.h.b16 %v234
  %v902 = vunpack.c.l.b16 %v235
  %v903 = vunpack.c.h.b16 %v235
  %v904 = vunpack.c.l.b16 %v236
  %v905 = vunpack.c.h.b16 %v236
  %v906 = vunpack.c.l.b16 %v237
  %v907 = vunpack.c.h.b16 %v237
  %v908 = vpack.c.b16 %v494, %v492
  %v909 = vpack.c.b16 %v495, %v493
  %v910 = vpack.c.b16 %v498, %v496
  %v911 = vpack.c.b16 %v499, %v497
  %v912 = vpack.c.b16 %v502, %v500
  %v913 = vpack.c.b16 %v503, %v501
  %v914 = vpack.c.b16 %v506, %v504
  %v915 = vpack.c.b16 %v507, %v505
  %v916 = vpack.c.b16 %v510, %v508
  %v917 = vpack.c.b16 %v511, %v509
  %v918 = vpack.c.b16 %v514, %v512
  %v919 = vpack.c.b16 %v515, %v513
  %v920 = vpack.c.b16 %v518, %v516
  %v921 = vpack.c.b16 %v519, %v517
  %v922 = vpack.c.b16 %v522, %v520
  %v923 = vpack.c.b16 %v523, %v521
  %v924 = vpack.c.b16 %v526, %v524
  %v925 = vpack.c.b16 %v527, %v525
  %v926 = vpack.c.b16 %v530, %v528
  %v927 = vpack.c.b16 %v531, %v529
  %v928 = vpack.c.b16 %v534, %v532
  %v929 = vpack.c.b16 %v535, %v533
  %v930 = vpack.c.b16 %v538, %v536
  %v931 = vpack.c.b16 %v539, %v537
  %v932 = vpack.c.b16 %v542, %v540
  %v933 = vpack.c.b16 %v543, %v541
  %v934 = vpack.c.b16 %v546, %v544
  %v935 = vpack.c.b16 %v547, %v545
  %v936 = vpack.c.b16 %v550, %v548
  %v937 = vpack.c.b16 %v551, %v549
  %v938 = vpack.c.b16 %v554, %v552
  %v939 = vpack.c.b16 %v555, %v553
  %v940 = vpack.c.b16 %v558, %v556
  %v941 = vpack.c.b16 %v559, %v557
  %v942 = vpack.c.b16 %v562, %v560
  %v943 = vpack.c.b16 %v563, %v561
  %v944 = vpack.c.b16 %v566, %v564
  %v945 = vpack.c.b16 %v567, %v565
  %v946 = vpack.c.b16 %v570, %v568
  %v947 = vpack.c.b16 %v571, %v569
  %v948 = vpack.c.b16 %v574, %v572
  %v949 = vpack.c.b16 %v575, %v573
  %v950 = vpack.c.b16 %v578, %v576
  %v951 = vpack.c.b16 %v579, %v577
  %v952 = vpack.c.b16 %v582, %v580
  %v953 = vpack.c.b16 %v583, %v581
  %v954 = vpack.c.b16 %v586, %v584
  %v955 = vpack.c.b16 %v587, %v585
  %v956 = vpack.c.b16 %v590, %v588
  %v957 = vpack.c.b16 %v591, %v589
  %v958 = vpack.c.b16 %v594, %v592
  %v959 = vpack.c.b16 %v595, %v593
  %v960 = vpack.c.b16 %v598, %v596
  %v961 = vpack.c.b16 %v599, %v597
  %v962 = vpack.c.b16 %v602, %v600
  %v963 = vpack.c.b16 %v603, %v601
  %v964 = vpack.c.b16 %v606, %v604
  %v965 = vpack.c.b16 %v607, %v605
  %v966 = vpack.c.b16 %v610, %v608
  %v967 = vpack.c.b16 %v611, %v609
  %v968 = vpack.c.b16 %v614, %v612
  %v969 = vpack.c.b16 %v615, %v613
  %v970 = vpack.c.b16 %v618, %v616
  %v971 = vpack.c.b16 %v619, %v617
  %v972 = vpack.c.b16 %v622, %v620
  %v973 = vpack.c.b16 %v623, %v621
  %v974 = vpack.c.b16 %v626, %v624
  %v975 = vpack.c.b16 %v627, %v625
  %v976 = vpack.c.b16 %v630, %v628
  %v977 = vpack.c.b16 %v631, %v629
  %v978 = vpack.c.b16 %v634, %v632
  %v979 = vpack.c.b16 %v635, %v633
  %v980 = vpack.c.b16 %v638, %v636
  %v981 = vpack.c.b16 %v639, %v637
  %v982 = vpack.c.b16 %v642, %v640
  %v983 = vpack.c.b16 %v643, %v641
  %v984 = vpack.c.b16 %v646, %v644
  %v985 = vpack.c.b16 %v647, %v645
  %v986 = vpack.c.b16 %v650, %v648
  %v987 = vpack.c.b16 %v651, %v649
  %v988 = vpack.c.b16 %v654, %v652
  %v989 = vpack.c.b16 %v655, %v653
  %v990 = vpack.c.b16 %v658, %v656
  %v991 = vpack.c.b16 %v659, %v657
  %v992 = vpack.c.b16 %v662, %v660
  %v993 = vpack.c.b16 %v663, %v661
  %v994 = vpack.c.b16 %v666, %v664
  %v995 = vpack.c.b16 %v667, %v665
  %v996 = vpack.c.b16 %v670, %v668
  %v997 = vpack.c.b16 %v671, %v669
  %v998 = vpack.c.b16 %v674, %v672
  %v999 = vpack.c.b16 %v675, %v673
  %v1000 = vpack.c.b16 %v678, %v676
  %v1001 = vpack.c.b16 %v679, %v677
  %v1002 = vpack.c.b16 %v682, %v680
  %v1003 = vpack.c.b16 %v683, %v681
  %v1004 = vpack.c.b16 %v686, %v684
  %v1005 = vpack.c.b16 %v687, %v685
  %v1006 = vpack.c.b16 %v690, %v688
  %v1007 = vpack.c.b16 %v691, %v689
  %v1008 = vpack.c.b16 %v694, %v692
  %v1009 = vpack.c.b16 %v695, %v693
  %v1010 = vpack.c.b16 %v698, %v696
  %v1011 = vpack.c.b16 %v699, %v697
  %v1012 = vpack.c.b16 %v702, %v700
  %v1013 = vpack.c.b16 %v703, %v701
  %v1014 = vpack.c.b16 %v706, %v704
  %v1015 = vpack.c.b16 %v707, %v705
  %v1016 = vpack.c.b16 %v710, %v708
  %v1017 = vpack.c.b16 %v711, %v709
  %v1018 = vpack.c.b16 %v714, %v712
  %v1019 = vpack.c.b16 %v715, %v713
  %v1020 = vpack.c.b16 %v718, %v716
  %v1021 = vpack.c.b16 %v719, %v717
  %v1022 = vpack.c.b16 %v722, %v720
  %v1023 = vpack.c.b16 %v723, %v721
  %v1024 = vpack.c.b16 %v726, %v724
  %v1025 = vpack.c.b16 %v727, %v725
  %v1026 = vpack.c.b16 %v730, %v728
  %v1027 = vpack.c.b16 %v731, %v729
  %v1028 = vpack.c.b16 %v734, %v732
  %v1029 = vpack.c.b16 %v735, %v733
  %v1030 = vpack.c.b16 %v738, %v736
  %v1031 = vpack.c.b16 %v739, %v737
  %v1032 = vpack.c.b16 %v742, %v740
  %v1033 = vpack.c.b16 %v743, %v741
  %v1034 = vpack.c.b16 %v746, %v744
  %v1035 = vpack.c.b16 %v747, %v745
  %v1036 = vpack.c.b16 %v750, %v748
  %v1037 = vpack.c.b16 %v751, %v749
  %v1038 = vpack.c.b16 %v754, %v752
  %v1039 = vpack.c.b16 %v755, %v753
  %v1040 = vpack.c.b16 %v758, %v756
  %v1041 = vpack.c.b16 %v759, %v757
  %v1042 = vpack.c.b16 %v762, %v760
  %v1043 = vpack.c.b16 %v763, %v761
  %v1044 = vpack.c.b16 %v766, %v764
  %v1045 = vpack.c.b16 %v767, %v765
  %v1046 = vpack.c.b16 %v770, %v768
  %v1047 = vpack.c.b16 %v771, %v769
  %v1048 = vpack.c.b16 %v774, %v772
  %v1049 = vpack.c.b16 %v775, %v773
  %v1050 = vpack.c.b16 %v778, %v776
  %v1051 = vpack.c.b16 %v779, %v777
  %v1052 = vpack.c.b16 %v782, %v780
  %v1053 = vpack.c.b16 %v783, %v781
  %v1054 = vpack.c.b16 %v786, %v784
  %v1055 = vpack.c.b16 %v787, %v785
  %v1056 = vpack.c.b16 %v790, %v788
  %v1057 = vpack.c.b16 %v791, %v789
  %v1058 = vpack.c.b16 %v794, %v792
  %v1059 = vpack.c.b16 %v795, %v793
  %v1060 = vpack.c.b16 %v798, %v796
  %v1061 = vpack.c.b16 %v799, %v797
  %v1062 = vpack.c.b16 %v802, %v800
  %v1063 = vpack.c.b16 %v803, %v801
  %v1064 = vpack.c.b16 %v806, %v804
  %v1065 = vpack.c.b16 %v807, %v805
  %v1066 = vpack.c.b16 %v810, %v808
  %v1067 = vpack.c.b16 %v811, %v809
  %v1068 = vpack.c.b16 %v814, %v812
  %v1069 = vpack.c.b16 %v815, %v813
  %v1070 = vpack.c.b16 %v818, %v816
  %v1071 = vpack.c.b16 %v819, %v817
  %v1072 = vpack.c.b16 %v822, %v820
  %v1073 = vpack.c.b16 %v823, %v821
  %v1074 = vpack.c.b16 %v826, %v824
  %v1075 = vpack.c.b16 %v827, %v825
  %v1076 = vpack.c.b16 %v830, %v828
  %v1077 = vpack.c.b16 %v831, %v829
  %v1078 = vpack.c.b16 %v834, %v832
  %v1079 = vpack.c.b16 %v835, %v833
  %v1080 = vpack.c.b16 %v838, %v836
  %v1081 = vpack.c.b16 %v839, %v837
  %v1082 = vpack.c.b16 %v842, %v840
  %v1083 = vpack.c.b16 %v843, %v841
  %v1084 = vpack.c.b16 %v846, %v844
  %v1085 = vpack.c.b16 %v847, %v845
  %v1086 = vpack.c.b16 %v850, %v848
  %v1087 = vpack.c.b16 %v851, %v849
  %v1088 = vpack.c.b16 %v854, %v852
  %v1089 = vpack.c.b16 %v855, %v853
  %v1090 = vpack.c.b16 %v858, %v856
  %v1091 = vpack.c.b16 %v859, %v857
  %v1092 = vpack.c.b16 %v862, %v860
  %v1093 = vpack.c.b16 %v863, %v861
  %v1094 = vpack.c.b16 %v866, %v864
  %v1095 = vpack.c.b16 %v867, %v865
  %v1096 = vpack.c.b16 %v870, %v868
  %v1097 = vpack.c.b16 %v871, %v869
  %v1098 = vpack.c.b16 %v874, %v872
  %v1099 = vpack.c.b16 %v875, %v873
  %v1100 = vpack.c.b16 %v878, %v876
  %v1101 = vpack.c.b16 %v879, %v877
  %v1102 = vpack.c.b16 %v882, %v880
  %v1103 = vpack.c.b16 %v883, %v881
  %v1104 = vpack.c.b16 %v886, %v884
  %v1105 = vpack.c.b16 %v887, %v885
  %v1106 = vpack.c.b16 %v890, %v888
  %v1107 = vpack.c.b16 %v891, %v889
  %v1108 = vpack.c.b16 %v894, %v892
  %v1109 = vpack.c.b16 %v895, %v893
  %v1110 = vpack.c.b16 %v898, %v896
  %v1111 = vpack.c.b16 %v899, %v897
  %v1112 = vpack.c.b16 %v902, %v900
  %v1113 = vpack.c.b16 %v903, %v901
  %v1114 = vpack.c.b16 %v906, %v904
  %v1115 = vpack.c.b16 %v907, %v905
  %1324 = vmatprep.subr.bf16.mxu0 %v923
  %1325 = vmatpush1.bf16.msra.mxu0 %v922
  %1326 = vmatprep.subr.bf16.mxu0 %v921
  %1327 = vmatpush1.bf16.msra.mxu0 %v920
  %1328 = vmatprep.subr.bf16.mxu0 %v919
  %1329 = vmatpush1.bf16.msra.mxu0 %v918
  %1330 = vmatprep.subr.bf16.mxu0 %v917
  %1331 = vmatpush1.bf16.msra.mxu0 %v916
  %1332 = vmatprep.subr.bf16.mxu0 %v915
  %1333 = vmatpush1.bf16.msra.mxu0 %v914
  %1334 = vmatprep.subr.bf16.mxu0 %v913
  %1335 = vmatpush1.bf16.msra.mxu0 %v912
  %1336 = vmatprep.subr.bf16.mxu0 %v911
  %1337 = vmatpush1.bf16.msra.mxu0 %v910
  %1338 = vmatprep.subr.bf16.mxu0 %v909
  %1339 = vmatpush1.bf16.msra.mxu0 %v908
  %1340 = vmatprep.subr.bf16.mxu0 %v939
  %1341 = vmatpush2.bf16.msra.mxu0 %v938
  %1342 = vmatprep.subr.bf16.mxu0 %v937
  %1343 = vmatpush2.bf16.msra.mxu0 %v936
  %1344 = vmatprep.subr.bf16.mxu0 %v935
  %1345 = vmatpush2.bf16.msra.mxu0 %v934
  %1346 = vmatprep.subr.bf16.mxu0 %v933
  %1347 = vmatpush2.bf16.msra.mxu0 %v932
  %1348 = vmatprep.subr.bf16.mxu0 %v931
  %1349 = vmatpush2.bf16.msra.mxu0 %v930
  %1350 = vmatprep.subr.bf16.mxu0 %v929
  %1351 = vmatpush2.bf16.msra.mxu0 %v928
  %1352 = vmatprep.subr.bf16.mxu0 %v927
  %1353 = vmatpush2.bf16.msra.mxu0 %v926
  %1354 = vmatprep.subr.bf16.mxu0 %v925
  %1355 = vmatpush2.bf16.msra.mxu0 %v924
  %1356 = vmatprep.mubr.bf16.mxu0 %v259
  %1357 = vmatmul.mubr.bf16.gmra.mxu0 %v258
  %v1358 = vpop.f32.mrf.mxu0
  %v1359 = vadd.f32 0.0, %v1358
  %v1360 = vpop.f32.mrf.mxu0
  %v1361 = vadd.f32 0.0, %v1360
  %v1362 = vpop.f32.mrf.mxu0
  %v1363 = vpop.f32.mrf.mxu0
  %1364 = vdwg.mxu0
  %1365 = vmatprep.subr.bf16.mxu0 %v955
  %1366 = vmatpush1.bf16.msra.mxu0 %v954
  %1367 = vmatprep.subr.bf16.mxu0 %v953
  %1368 = vmatpush1.bf16.msra.mxu0 %v952
  %1369 = vmatprep.subr.bf16.mxu0 %v951
  %1370 = vmatpush1.bf16.msra.mxu0 %v950
  %1371 = vmatprep.subr.bf16.mxu0 %v949
  %1372 = vmatpush1.bf16.msra.mxu0 %v948
  %1373 = vmatprep.subr.bf16.mxu0 %v947
  %1374 = vmatpush1.bf16.msra.mxu0 %v946
  %1375 = vmatprep.subr.bf16.mxu0 %v945
  %1376 = vmatpush1.bf16.msra.mxu0 %v944
  %1377 = vmatprep.subr.bf16.mxu0 %v943
  %1378 = vmatpush1.bf16.msra.mxu0 %v942
  %1379 = vmatprep.subr.bf16.mxu0 %v941
  %1380 = vmatpush1.bf16.msra.mxu0 %v940
  %1381 = vmatprep.subr.bf16.mxu0 %v971
  %1382 = vmatpush2.bf16.msra.mxu0 %v970
  %1383 = vmatprep.subr.bf16.mxu0 %v969
  %1384 = vmatpush2.bf16.msra.mxu0 %v968
  %1385 = vmatprep.subr.bf16.mxu0 %v967
  %1386 = vmatpush2.bf16.msra.mxu0 %v966
  %1387 = vmatprep.subr.bf16.mxu0 %v965
  %1388 = vmatpush2.bf16.msra.mxu0 %v964
  %1389 = vmatprep.subr.bf16.mxu0 %v963
  %1390 = vmatpush2.bf16.msra.mxu0 %v962
  %1391 = vmatprep.subr.bf16.mxu0 %v961
  %1392 = vmatpush2.bf16.msra.mxu0 %v960
  %1393 = vmatprep.subr.bf16.mxu0 %v959
  %1394 = vmatpush2.bf16.msra.mxu0 %v958
  %1395 = vmatprep.subr.bf16.mxu0 %v957
  %1396 = vmatpush2.bf16.msra.mxu0 %v956
  %1397 = vmatprep.mubr.bf16.mxu0 %v261
  %1398 = vmatmul.mubr.bf16.gmra.mxu0 %v260
  %v1399 = vpop.f32.mrf.mxu0
  %v1400 = vadd.f32 %v1359, %v1399
  %v1401 = vpop.f32.mrf.mxu0
  %v1402 = vadd.f32 %v1361, %v1401
  %v1403 = vpop.f32.mrf.mxu0
  %v1404 = vpop.f32.mrf.mxu0
  %1405 = vdwg.mxu0
  %1406 = vmatprep.subr.bf16.mxu0 %v987
  %1407 = vmatpush1.bf16.msra.mxu0 %v986
  %1408 = vmatprep.subr.bf16.mxu0 %v985
  %1409 = vmatpush1.bf16.msra.mxu0 %v984
  %1410 = vmatprep.subr.bf16.mxu0 %v983
  %1411 = vmatpush1.bf16.msra.mxu0 %v982
  %1412 = vmatprep.subr.bf16.mxu0 %v981
  %1413 = vmatpush1.bf16.msra.mxu0 %v980
  %1414 = vmatprep.subr.bf16.mxu0 %v979
  %1415 = vmatpush1.bf16.msra.mxu0 %v978
  %1416 = vmatprep.subr.bf16.mxu0 %v977
  %1417 = vmatpush1.bf16.msra.mxu0 %v976
  %1418 = vmatprep.subr.bf16.mxu0 %v975
  %1419 = vmatpush1.bf16.msra.mxu0 %v974
  %1420 = vmatprep.subr.bf16.mxu0 %v973
  %1421 = vmatpush1.bf16.msra.mxu0 %v972
  %1422 = vmatprep.subr.bf16.mxu0 %v1003
  %1423 = vmatpush2.bf16.msra.mxu0 %v1002
  %1424 = vmatprep.subr.bf16.mxu0 %v1001
  %1425 = vmatpush2.bf16.msra.mxu0 %v1000
  %1426 = vmatprep.subr.bf16.mxu0 %v999
  %1427 = vmatpush2.bf16.msra.mxu0 %v998
  %1428 = vmatprep.subr.bf16.mxu0 %v997
  %1429 = vmatpush2.bf16.msra.mxu0 %v996
  %1430 = vmatprep.subr.bf16.mxu0 %v995
  %1431 = vmatpush2.bf16.msra.mxu0 %v994
  %1432 = vmatprep.subr.bf16.mxu0 %v993
  %1433 = vmatpush2.bf16.msra.mxu0 %v992
  %1434 = vmatprep.subr.bf16.mxu0 %v991
  %1435 = vmatpush2.bf16.msra.mxu0 %v990
  %1436 = vmatprep.subr.bf16.mxu0 %v989
  %1437 = vmatpush2.bf16.msra.mxu0 %v988
  %1438 = vmatprep.mubr.bf16.mxu0 %v263
  %1439 = vmatmul.mubr.bf16.gmra.mxu0 %v262
  %v1440 = vpop.f32.mrf.mxu0
  %v1441 = vadd.f32 %v1400, %v1440
  %v1442 = vpop.f32.mrf.mxu0
  %v1443 = vadd.f32 %v1402, %v1442
  %v1444 = vpop.f32.mrf.mxu0
  %v1445 = vpop.f32.mrf.mxu0
  %1446 = vdwg.mxu0
  %1447 = vmatprep.subr.bf16.mxu0 %v1019
  %1448 = vmatpush1.bf16.msra.mxu0 %v1018
  %1449 = vmatprep.subr.bf16.mxu0 %v1017
  %1450 = vmatpush1.bf16.msra.mxu0 %v1016
  %1451 = vmatprep.subr.bf16.mxu0 %v1015
  %1452 = vmatpush1.bf16.msra.mxu0 %v1014
  %1453 = vmatprep.subr.bf16.mxu0 %v1013
  %1454 = vmatpush1.bf16.msra.mxu0 %v1012
  %1455 = vmatprep.subr.bf16.mxu0 %v1011
  %1456 = vmatpush1.bf16.msra.mxu0 %v1010
  %1457 = vmatprep.subr.bf16.mxu0 %v1009
  %1458 = vmatpush1.bf16.msra.mxu0 %v1008
  %1459 = vmatprep.subr.bf16.mxu0 %v1007
  %1460 = vmatpush1.bf16.msra.mxu0 %v1006
  %1461 = vmatprep.subr.bf16.mxu0 %v1005
  %1462 = vmatpush1.bf16.msra.mxu0 %v1004
  %1463 = vmatprep.subr.bf16.mxu0 %v1035
  %1464 = vmatpush2.bf16.msra.mxu0 %v1034
  %1465 = vmatprep.subr.bf16.mxu0 %v1033
  %1466 = vmatpush2.bf16.msra.mxu0 %v1032
  %1467 = vmatprep.subr.bf16.mxu0 %v1031
  %1468 = vmatpush2.bf16.msra.mxu0 %v1030
  %1469 = vmatprep.subr.bf16.mxu0 %v1029
  %1470 = vmatpush2.bf16.msra.mxu0 %v1028
  %1471 = vmatprep.subr.bf16.mxu0 %v1027
  %1472 = vmatpush2.bf16.msra.mxu0 %v1026
  %1473 = vmatprep.subr.bf16.mxu0 %v1025
  %1474 = vmatpush2.bf16.msra.mxu0 %v1024
  %1475 = vmatprep.subr.bf16.mxu0 %v1023
  %1476 = vmatpush2.bf16.msra.mxu0 %v1022
  %1477 = vmatprep.subr.bf16.mxu0 %v1021
  %1478 = vmatpush2.bf16.msra.mxu0 %v1020
  %1479 = vmatprep.mubr.bf16.mxu0 %v265
  %1480 = vmatmul.mubr.bf16.gmra.mxu0 %v264
  %v1481 = vpop.f32.mrf.mxu0
  %v1482 = vadd.f32 %v1441, %v1481
  %v1483 = vpop.f32.mrf.mxu0
  %v1484 = vadd.f32 %v1443, %v1483
  %v1485 = vpop.f32.mrf.mxu0
  %v1486 = vpop.f32.mrf.mxu0
  %1487 = vdwg.mxu0
  %1488 = vmatprep.subr.bf16.mxu0 %v1051
  %1489 = vmatpush1.bf16.msra.mxu0 %v1050
  %1490 = vmatprep.subr.bf16.mxu0 %v1049
  %1491 = vmatpush1.bf16.msra.mxu0 %v1048
  %1492 = vmatprep.subr.bf16.mxu0 %v1047
  %1493 = vmatpush1.bf16.msra.mxu0 %v1046
  %1494 = vmatprep.subr.bf16.mxu0 %v1045
  %1495 = vmatpush1.bf16.msra.mxu0 %v1044
  %1496 = vmatprep.subr.bf16.mxu0 %v1043
  %1497 = vmatpush1.bf16.msra.mxu0 %v1042
  %1498 = vmatprep.subr.bf16.mxu0 %v1041
  %1499 = vmatpush1.bf16.msra.mxu0 %v1040
  %1500 = vmatprep.subr.bf16.mxu0 %v1039
  %1501 = vmatpush1.bf16.msra.mxu0 %v1038
  %1502 = vmatprep.subr.bf16.mxu0 %v1037
  %1503 = vmatpush1.bf16.msra.mxu0 %v1036
  %1504 = vmatprep.subr.bf16.mxu0 %v1067
  %1505 = vmatpush2.bf16.msra.mxu0 %v1066
  %1506 = vmatprep.subr.bf16.mxu0 %v1065
  %1507 = vmatpush2.bf16.msra.mxu0 %v1064
  %1508 = vmatprep.subr.bf16.mxu0 %v1063
  %1509 = vmatpush2.bf16.msra.mxu0 %v1062
  %1510 = vmatprep.subr.bf16.mxu0 %v1061
  %1511 = vmatpush2.bf16.msra.mxu0 %v1060
  %1512 = vmatprep.subr.bf16.mxu0 %v1059
  %1513 = vmatpush2.bf16.msra.mxu0 %v1058
  %1514 = vmatprep.subr.bf16.mxu0 %v1057
  %1515 = vmatpush2.bf16.msra.mxu0 %v1056
  %1516 = vmatprep.subr.bf16.mxu0 %v1055
  %1517 = vmatpush2.bf16.msra.mxu0 %v1054
  %1518 = vmatprep.subr.bf16.mxu0 %v1053
  %1519 = vmatpush2.bf16.msra.mxu0 %v1052
  %1520 = vmatprep.mubr.bf16.mxu0 %v267
  %1521 = vmatmul.mubr.bf16.gmra.mxu0 %v266
  %v1522 = vpop.f32.mrf.mxu0
  %v1523 = vadd.f32 %v1482, %v1522
  %v1524 = vpop.f32.mrf.mxu0
  %v1525 = vadd.f32 %v1484, %v1524
  %v1526 = vpop.f32.mrf.mxu0
  %v1527 = vpop.f32.mrf.mxu0
  %1528 = vdwg.mxu0
  %1529 = vmatprep.subr.bf16.mxu0 %v1083
  %1530 = vmatpush1.bf16.msra.mxu0 %v1082
  %1531 = vmatprep.subr.bf16.mxu0 %v1081
  %1532 = vmatpush1.bf16.msra.mxu0 %v1080
  %1533 = vmatprep.subr.bf16.mxu0 %v1079
  %1534 = vmatpush1.bf16.msra.mxu0 %v1078
  %1535 = vmatprep.subr.bf16.mxu0 %v1077
  %1536 = vmatpush1.bf16.msra.mxu0 %v1076
  %1537 = vmatprep.subr.bf16.mxu0 %v1075
  %1538 = vmatpush1.bf16.msra.mxu0 %v1074
  %1539 = vmatprep.subr.bf16.mxu0 %v1073
  %1540 = vmatpush1.bf16.msra.mxu0 %v1072
  %1541 = vmatprep.subr.bf16.mxu0 %v1071
  %1542 = vmatpush1.bf16.msra.mxu0 %v1070
  %1543 = vmatprep.subr.bf16.mxu0 %v1069
  %1544 = vmatpush1.bf16.msra.mxu0 %v1068
  %1545 = vmatprep.subr.bf16.mxu0 %v1099
  %1546 = vmatpush2.bf16.msra.mxu0 %v1098
  %1547 = vmatprep.subr.bf16.mxu0 %v1097
  %1548 = vmatpush2.bf16.msra.mxu0 %v1096
  %1549 = vmatprep.subr.bf16.mxu0 %v1095
  %1550 = vmatpush2.bf16.msra.mxu0 %v1094
  %1551 = vmatprep.subr.bf16.mxu0 %v1093
  %1552 = vmatpush2.bf16.msra.mxu0 %v1092
  %1553 = vmatprep.subr.bf16.mxu0 %v1091
  %1554 = vmatpush2.bf16.msra.mxu0 %v1090
  %1555 = vmatprep.subr.bf16.mxu0 %v1089
  %1556 = vmatpush2.bf16.msra.mxu0 %v1088
  %1557 = vmatprep.subr.bf16.mxu0 %v1087
  %1558 = vmatpush2.bf16.msra.mxu0 %v1086
  %1559 = vmatprep.subr.bf16.mxu0 %v1085
  %1560 = vmatpush2.bf16.msra.mxu0 %v1084
  %1561 = vmatprep.mubr.bf16.mxu0 %v269
  %1562 = vmatmul.mubr.bf16.gmra.mxu0 %v268
  %v1563 = vpop.f32.mrf.mxu0
  %v1564 = vadd.f32 %v1523, %v1563
  %v1565 = vpop.f32.mrf.mxu0
  %v1566 = vadd.f32 %v1525, %v1565
  %v1567 = vpop.f32.mrf.mxu0
  %v1568 = vpop.f32.mrf.mxu0
  %1569 = vdwg.mxu0
  %1570 = vmatprep.subr.bf16.mxu0 %v1115
  %1571 = vmatpush1.bf16.msra.mxu0 %v1114
  %1572 = vmatprep.subr.bf16.mxu0 %v1113
  %1573 = vmatpush1.bf16.msra.mxu0 %v1112
  %1574 = vmatprep.subr.bf16.mxu0 %v1111
  %1575 = vmatpush1.bf16.msra.mxu0 %v1110
  %1576 = vmatprep.subr.bf16.mxu0 %v1109
  %1577 = vmatpush1.bf16.msra.mxu0 %v1108
  %1578 = vmatprep.subr.bf16.mxu0 %v1107
  %1579 = vmatpush1.bf16.msra.mxu0 %v1106
  %1580 = vmatprep.subr.bf16.mxu0 %v1105
  %1581 = vmatpush1.bf16.msra.mxu0 %v1104
  %1582 = vmatprep.subr.bf16.mxu0 %v1103
  %1583 = vmatpush1.bf16.msra.mxu0 %v1102
  %1584 = vmatprep.subr.bf16.mxu0 %v1101
  %1585 = vmatpush1.bf16.msra.mxu0 %v1100
  %1586 = vmatprep.subr.bf16.mxu0 0
  %1587 = vmatpush2.bf16.msra.mxu0 0
  %1588 = vmatprep.subr.bf16.mxu0 0
  %1589 = vmatpush2.bf16.msra.mxu0 0
  %1590 = vmatprep.subr.bf16.mxu0 0
  %1591 = vmatpush2.bf16.msra.mxu0 0
  %1592 = vmatprep.subr.bf16.mxu0 0
  %1593 = vmatpush2.bf16.msra.mxu0 0
  %1594 = vmatprep.subr.bf16.mxu0 0
  %1595 = vmatpush2.bf16.msra.mxu0 0
  %1596 = vmatprep.subr.bf16.mxu0 0
  %1597 = vmatpush2.bf16.msra.mxu0 0
  %1598 = vmatprep.subr.bf16.mxu0 0
  %1599 = vmatpush2.bf16.msra.mxu0 0
  %1600 = vmatprep.subr.bf16.mxu0 0
  %1601 = vmatpush2.bf16.msra.mxu0 0
  %1602 = vmatprep.mubr.bf16.mxu0 0
  %1603 = vmatmul.mubr.bf16.gmra.mxu0 %v270
  %v1604 = vpop.f32.mrf.mxu0
  %v1605 = vadd.f32 %v1564, %v1604
  %v1606 = vpop.f32.mrf.mxu0
  %v1607 = vadd.f32 %v1566, %v1606
  %v1608 = vpop.f32.mrf.mxu0
  %v1609 = vpop.f32.mrf.mxu0
  %1610 = vdwg.mxu0
  %v1611 = vadd.f32 %v21, %v1605
  %v1612 = vadd.f32 %v22, %v1607
  %1613 = vst [vmem:[#allocation2] sm:$0xff] %v1611
  %1614 = vst [vmem:[#allocation2 + $0x8] sm:$0xff] %v1612
  // Predicated region
  $region18: #{resnet_modified_medium_forward.1} parent=0 // pred_check
    %p1615 = pneg %p15
  $region19: #{resnet_modified_medium_forward.1} parent=0 // pred_check_branch
    %1617 = sbr.rel (%p1615) target = $region21
  $region20: #{resnet_modified_medium_forward.1} parent=0 // pred_region
    %v1618 = vld [vmem:[#allocation2] sm:$0xff]
    %v1619 = vld [vmem:[#allocation2 + $0x8] sm:$0xff]
    %v1620 = vld [vmem:[%s2] sm:$0x3]
    %v1622 = vlaneseq
    %v1623 = vshrl.u32 %v1622, 7
    %v1624 = vsub.s32 0, %v1623
    %v1625 = vrot.slane %v1620, %v1624
    %v1626 = vlaneseq
    %v1627 = vshrl.u32 %v1626, 7
    %v1628 = vsub.s32 1, %v1627
    %v1629 = vrot.slane %v1620, %v1628
    %v1632 = vadd.f32 %v1618, %v1625
    %v1633 = vadd.f32 %v1619, %v1629
    %vm1634 = vcmp.ge.f32.partialorder %v1632, 0.0
    %vm1635 = vcmp.ge.f32.partialorder %v1633, 0.0
    %v1636 = vmul.f32 %v1632, 0.01
    %v1637 = vmul.f32 %v1633, 0.01
    %v1638 = vsel %vm1634, %v1632, %v1636
    %v1639 = vsel %vm1635, %v1633, %v1637
    %1640 = vst [vmem:[%s3] sm:$0xff] %v1638
    %1641 = vst [vmem:[%s3 + $0x8] sm:$0xff] %v1639
  $region21: #{resnet_modified_medium_forward.1} parent=0 // pred_fallthru
    _
  // Predicated region
  $region22: #{resnet_modified_medium_forward.1} parent=0 // pred_check
    _
  $region23: #{resnet_modified_medium_forward.1} parent=0 // pred_check_branch
    %1643 = sbr.rel (0) target = $region25
  $region24: #{resnet_modified_medium_forward.1} parent=0 // pred_region
    _
  $region25: #{resnet_modified_medium_forward.1} parent=0 // pred_fallthru
    _
  // Predicated region
  $region26: #{resnet_modified_medium_forward.1} parent=0 // pred_check
    _
  $region27: #{resnet_modified_medium_forward.1} parent=0 // pred_check_branch
    %1645 = sbr.rel (0) target = $region29
  $region28: #{resnet_modified_medium_forward.1} parent=0 // pred_region
    _
  $region29: #{resnet_modified_medium_forward.1} parent=0 // pred_fallthru
    _

</llo_original>
